<compile_context>
chip_gen: v5e
topology: v5e:2x2
jax: 0.10.0
libtpu: 0.0.40
codegen_flags: <defaults>
</compile_context>

<pallas_src>
import jax
import jax.numpy as jnp
from jax.experimental import pallas as pl
from jax.experimental.pallas import tpu as pltpu


def _hardswish_kernel(x_ref, o_ref):
    x = x_ref[...]
    # hardswish(x) = x * relu6(x + 3) / 6  -- multiply by the constant 1/6
    # instead of dividing (keeps the kernel cleanly DMA-bound; <= 1 ulp diff).
    o_ref[...] = (x * jnp.clip(x + 3.0, 0.0, 6.0) * (1.0 / 6.0)).astype(o_ref.dtype)


_LANE_CANDIDATES = (2048, 1024, 512, 256, 128)


def hardswish(x, *, inplace=False, target_block_bytes=4 << 20):
    """Elementwise hardswish for any shape / float dtype (matches F.hardswish)."""
    orig_shape = x.shape
    dtype = x.dtype
    n = x.size
    itemsize = jnp.dtype(dtype).itemsize
    # Native sublane packing: 8 rows for 32-bit, 16 for bf16, 32 for 8-bit.
    pack = max(8, 32 // itemsize)

    # Widest lane-dense slab width that divides n (no pad, no tail slice).
    # Prefer widths that leave at least `pack` rows so vregs are fully packed.
    lanes = None
    for cand in _LANE_CANDIDATES:
        if n % cand == 0 and n // cand >= pack:
            lanes = cand
            break
    if lanes is None:
        for cand in _LANE_CANDIDATES:
            if n % cand == 0:
                lanes = cand
                break

    if lanes is None:
        # Rare fallback: element count not a multiple of 128.  A fused XLA
        # elementwise op is already at the read-N + write-N HBM floor, while
        # any Pallas route here would add pad/slice/concat passes.
        return (x * jnp.clip(x + 3.0, 0.0, 6.0) * (1.0 / 6.0)).astype(dtype)

    rows = n // lanes
    x2d = x.reshape(rows, lanes)  # metadata-only for contiguous input

    # Row tile sized for ~target_block_bytes per block, multiple of `pack`.
    tr = max(pack, (target_block_bytes // (lanes * itemsize)) // pack * pack)
    tr = min(tr, rows)
    # Keep at least 2-4 grid steps when the array allows it: double-buffering
    # only hides HBM latency when there is a next block to prefetch and a
    # previous one to write back, and v7x's 2 TensorCores share the parallel
    # grid axis (the old grid=1 fast path defeated both).
    if rows >= 2 * pack:
        steps = min(4, rows // pack)
        tr = min(tr, max(pack, (rows // steps) // pack * pack))
    grid = pl.cdiv(rows, tr)  # partial tail block handled by masked I/O

    out2d = pl.pallas_call(
        _hardswish_kernel,
        out_shape=jax.ShapeDtypeStruct((rows, lanes), dtype),
        grid=(grid,),
        in_specs=[pl.BlockSpec((tr, lanes), lambda i: (i, 0))],
        out_specs=pl.BlockSpec((tr, lanes), lambda i: (i, 0)),
        compiler_params=pltpu.CompilerParams(
            dimension_semantics=("parallel",),
            # 4 MiB blocks double-buffered for in + out = 16 MiB, which equals
            # v5e's scoped-VMEM default; raise the limit so the same tiling is
            # safe on v5e / v6e / v7x (all have >= 64 MiB physical VMEM).
            vmem_limit_bytes=32 << 20,
        ),
        cost_estimate=pl.CostEstimate(
            flops=4 * n, transcendentals=0, bytes_accessed=2 * n * itemsize
        ),
        # Mirrors the module's `inplace` flag; only truly in-place when the
        # caller donates x at the jit boundary.
        input_output_aliases=({0: 0} if inplace else {}),
    )(x2d)

    return out2d.reshape(orig_shape)


if __name__ == "__main__":
    def ref_fn(v):
        return v * jnp.clip(v + 3.0, 0.0, 6.0) / 6.0

    key = jax.random.PRNGKey(0)
    # NCHW input, as a PyTorch conv activation would be.
    x = jax.random.normal(key, (2, 4, 16, 16), dtype=jnp.float32) * 4.0
    y = jax.block_until_ready(hardswish(x))
    assert y.shape == x.shape and y.dtype == x.dtype
    assert jnp.allclose(y, ref_fn(x), atol=1e-5, rtol=1e-5)

    # Exercise a multi-step grid (grid=2 with this shape/dtype).
    x2 = jax.random.normal(jax.random.PRNGKey(1), (4, 8, 32, 32), dtype=jnp.float32) * 4.0
    y2 = jax.block_until_ready(hardswish(x2))
    assert jnp.allclose(y2, ref_fn(x2), atol=1e-5, rtol=1e-5)

    # bf16 path (sublane packing = 16).
    x3 = (jax.random.normal(jax.random.PRNGKey(2), (2, 4, 16, 16)) * 4.0).astype(jnp.bfloat16)
    y3 = jax.block_until_ready(hardswish(x3))
    assert y3.dtype == jnp.bfloat16
    assert jnp.allclose(y3.astype(jnp.float32), ref_fn(x3.astype(jnp.float32)),
                        atol=3e-2, rtol=3e-2)

    # Odd element count (not a multiple of 128) -> fused-XLA fallback.
    x4 = jax.random.normal(jax.random.PRNGKey(3), (3, 5, 7), dtype=jnp.float32) * 4.0
    y4 = jax.block_until_ready(hardswish(x4))
    assert y4.shape == x4.shape and jnp.allclose(y4, ref_fn(x4), atol=1e-5, rtol=1e-5)

    print("KERNEL_OK")
</pallas_src>

<mosaic_0001>
module attributes {stable_mosaic.version = 11 : i64} {
  func.func @_hardswish_kernel(%arg0: i32, %arg1: memref<8x256xf32, #tpu.memory_space<vmem>>, %arg2: memref<8x256xf32, #tpu.memory_space<vmem>>) attributes {dimension_semantics = [#tpu.dimension_semantics<parallel>], iteration_bounds = array<i64: 1>, scalar_prefetch = 0 : i64, scratch_operands = 0 : i64, tpu.core_type = #tpu.core_type<tc>, window_params = [{transform_indices = @transform_0, window_bounds = array<i64: 8, 256>}, {transform_indices = @transform_1, window_bounds = array<i64: 8, 256>}]} {
    %c0 = arith.constant 0 : index
    %c0_0 = arith.constant 0 : index
    %0 = vector.load %arg1[%c0, %c0_0] : memref<8x256xf32, #tpu.memory_space<vmem>>, vector<8x256xf32>
    %cst = arith.constant 3.000000e+00 : f32
    %1 = vector.broadcast %cst : f32 to vector<8x256xf32>
    %2 = arith.addf %0, %1 : vector<8x256xf32>
    %cst_1 = arith.constant 0.000000e+00 : f32
    %cst_2 = arith.constant 6.000000e+00 : f32
    %3 = vector.broadcast %cst_1 : f32 to vector<8x256xf32>
    %4 = arith.maximumf %3, %2 : vector<8x256xf32>
    %5 = vector.broadcast %cst_2 : f32 to vector<8x256xf32>
    %6 = arith.minimumf %5, %4 : vector<8x256xf32>
    %7 = arith.mulf %0, %6 : vector<8x256xf32>
    %cst_3 = arith.constant 0.166666672 : f32
    %8 = vector.broadcast %cst_3 : f32 to vector<8x256xf32>
    %9 = arith.mulf %7, %8 : vector<8x256xf32>
    %c0_4 = arith.constant 0 : index
    %c0_5 = arith.constant 0 : index
    %10 = vector.load %arg2[%c0_4, %c0_5] : memref<8x256xf32, #tpu.memory_space<vmem>>, vector<8x256xf32>
    tpu.vector_store %arg2[%c0_4, %c0_5], %9 {strides = array<i32>} : memref<8x256xf32, #tpu.memory_space<vmem>>, vector<8x256xf32>,
    return
  }
  func.func @transform_0(%arg0: i32) -> (i32, i32) {
    %c0_i32 = arith.constant 0 : i32
    %c0_i32_0 = arith.constant 0 : i32
    return %arg0, %c0_i32 : i32, i32
  }
  func.func @transform_1(%arg0: i32) -> (i32, i32) {
    %c0_i32 = arith.constant 0 : i32
    %c0_i32_0 = arith.constant 0 : i32
    return %arg0, %c0_i32 : i32, i32
  }
}

</mosaic_0001>

<llo_original>
// kernel: tpu_custom_call.1
$region0: #{tpu_custom_call.1}
  #allocation0 [shape = 'u32[]', space=smem, size = 0x4, offset = 0x4, fixed_abs, tag = 'smem constant byte address 0x4 - core index']
  #allocation1 [shape = 'u32[72,128]{1,0:T(1,128)}', space=vmem, size = 0x9000, scoped, tag = 'internal scratch']
  %s0 = inlined_call_operand.hbm [shape: f32[8,256], index: 0, kind: input, shape index: {}]
  %s1 = inlined_call_operand.hbm [shape: f32[8,256], index: 1, kind: output, shape index: {}]
  %s2 = sld [smem:[#allocation0]]
  $region18: #{tpu_custom_call.1} parent=0
    _
  %s4 = ssub.s32 1, %s2
  %s5 = scalar_select 0, %s4, %s2
  $region1: #{tpu_custom_call.1} parent=0
    #allocation2 [shape = 'u8[8192]{0}', space=vmem, size = 0x2000, scoped, tag = 'input window, operand 0, single buffered']
    #allocation3 [shape = 's32[1]{0}', space=sflag, size = 0x4, scoped, tag = 'scoped memory for tpu_custom_call.1']
    #allocation4 [shape = 's32[1]{0}', space=sflag, size = 0x4, scoped, tag = 'scoped memory for tpu_custom_call.1']
    #allocation5 [shape = 'u8[8192]{0}', space=vmem, size = 0x2000, scoped, tag = 'output window, operand 0, single buffered']
    %6 = vsyncpa [#allocation3], 0
    %7 = vsyncpa [#allocation4], 0
    // Predicated region
    $region2: #{tpu_custom_call.1} parent=1 // pred_check
      _
    $region3: #{tpu_custom_call.1} parent=1 // pred_check_branch
      %9 = sbr.rel (0) target = $region5
    $region4: #{tpu_custom_call.1} parent=1 // pred_region
      %11 = vsyncadd [#allocation3], 0
      %s13 = sshll.u32 %s0, 4
      %s14 = int_to_ptr.hbm [resolvable:$true] %s13
      %s15 = sshll.u32 [#allocation2], 4
      %s16 = int_to_ptr.vmem [resolvable:$true] %s15
      %18 = dma.hbm_to_vmem [thread:$0]  %s14, 256, %s16, [#allocation3]
    $region5: #{tpu_custom_call.1} parent=1 // pred_fallthru
      _
    // Predicated region
    $region6: #{tpu_custom_call.1} parent=1 // pred_check
      _
    $region7: #{tpu_custom_call.1} parent=1 // pred_check_branch
      %20 = sbr.rel (0) target = $region9
    $region8: #{tpu_custom_call.1} parent=1 // pred_region
      %22 = dma.done [#allocation3], 256
    $region9: #{tpu_custom_call.1} parent=1 // pred_fallthru
      _
    %v23 = vld [vmem:[#allocation2] sm:$0xff]
    %v24 = vld [vmem:[#allocation2 + $0x8] sm:$0xff]
    %v25 = vadd.f32 %v23, 3.0
    %v26 = vadd.f32 %v24, 3.0
    %v27 = vmax.f32 %v25, 0.0
    %v28 = vmax.f32 %v26, 0.0
    %v29 = vmin.f32 %v27, 6.0
    %v30 = vmin.f32 %v28, 6.0
    %v31 = vmul.f32 %v23, %v29
    %v32 = vmul.f32 %v24, %v30
    %v33 = vmul.f32 %v31, 0.16666667
    %v34 = vmul.f32 %v32, 0.16666667
    %35 = vst [vmem:[#allocation5] sm:$0xff] %v33
    %36 = vst [vmem:[#allocation5 + $0x8] sm:$0xff] %v34
    // Predicated region
    $region10: #{tpu_custom_call.1} parent=1 // pred_check
      _
    $region11: #{tpu_custom_call.1} parent=1 // pred_check_branch
      %38 = sbr.rel (0) target = $region13
    $region12: #{tpu_custom_call.1} parent=1 // pred_region
      %40 = vsyncadd [#allocation4], 0
      %s42 = sshll.u32 [#allocation5], 4
      %s43 = int_to_ptr.vmem [resolvable:$true] %s42
      %s44 = sshll.u32 %s1, 4
      %s45 = int_to_ptr.hbm [resolvable:$true] %s44
      %47 = dma.vmem_to_hbm [thread:$0]  %s43, 256, %s45, [#allocation4]
    $region13: #{tpu_custom_call.1} parent=1 // pred_fallthru
      _
    // Predicated region
    $region14: #{tpu_custom_call.1} parent=1 // pred_check
      _
    $region15: #{tpu_custom_call.1} parent=1 // pred_check_branch
      %49 = sbr.rel (0) target = $region17
    $region16: #{tpu_custom_call.1} parent=1 // pred_region
      %51 = dma.done [#allocation4], 256
    $region17: #{tpu_custom_call.1} parent=1 // pred_fallthru
      _
    %52 = vsyncpa [#allocation3], 1
    %53 = vsyncpa [#allocation4], 1

</llo_original>
